<compile_context>
chip_gen: v6e
topology: v6e:2x2x1
jax: 0.10.0
libtpu: 0.0.40
codegen_flags: <defaults>
</compile_context>

<pallas_src>
import functools

import jax
import jax.numpy as jnp
from jax.experimental import pallas as pl
from jax.experimental.pallas import tpu as pltpu

NEG_SLOPE = 0.01   # F.leaky_relu default negative_slope
N_LAYERS = 8
LATENT_LAYER = 3   # encoder ends after linear4 (index 3)
OUT_LANES = 128    # lane-dense packed output width


def _leaky_relu(v):
    # max(v, 0.01*v) == leaky_relu(v) for slope < 1; 2 VALU ops instead of 3.
    return jnp.maximum(v, NEG_SLOPE * v)


def net_kernel(x_ref, w_ref, out_ref, *, out_dim, n_chan, pack_dim):
    # x_ref:   (B, HW, C) f32, channels on the lane axis.
    # w_ref:   (8, D, D)  bf16, each layer's (in, out) matrix zero-padded to (D, D).
    # out_ref: (B, 128)   f32 packed output: [p (D) | z (D) | c (C) | zeros].
    x = x_ref[...]
    c = jnp.mean(x, axis=1)                         # (B, C) sublane reduce; channels stay in lanes
    bsz = c.shape[0]

    # Lane-pad the tiny mean result to D so all 8 layers use the uniform padded weights.
    h = jnp.concatenate(
        [c, jnp.zeros((bsz, pack_dim - n_chan), dtype=jnp.float32)], axis=-1)

    z = None
    for l in range(N_LAYERS - 1):
        # bf16 operands -> single-pass MXU matmul; accumulate in f32.
        v = jnp.dot(h.astype(jnp.bfloat16), w_ref[l],
                    preferred_element_type=jnp.float32)
        h = _leaky_relu(v)                          # elementwise stays f32
        if l == LATENT_LAYER:
            z = h                                   # (B, D); lanes >= H4 are 0

    logits = jnp.dot(h.astype(jnp.bfloat16), w_ref[N_LAYERS - 1],
                     preferred_element_type=jnp.float32)

    # Softmax restricted to the real `out_dim` lanes (padded lanes -> exactly 0).
    lane = jax.lax.broadcasted_iota(jnp.int32, logits.shape, 1)
    logits = jnp.where(lane < out_dim, logits, -1e30)
    m = jnp.max(logits, axis=-1, keepdims=True)
    e = jnp.exp(logits - m)
    p = e / jnp.sum(e, axis=-1, keepdims=True)      # exact normalization (essentially free)

    pad = jnp.zeros((bsz, OUT_LANES - 2 * pack_dim - n_chan), dtype=jnp.float32)
    out_ref[...] = jnp.concatenate([p, z, c, pad], axis=-1)  # one unmasked (B,128) store


def make_net_forward(weights):
    """Build a jitted forward.  Weight packing is hoisted out of the per-call path."""
    dims_in = [w.shape[0] for w in weights]
    dims_out = [w.shape[1] for w in weights]
    D = max(dims_in + dims_out)                     # packed width (32 here)
    C = dims_in[0]
    out_dim = dims_out[-1]
    z_dim = dims_out[LATENT_LAYER]
    assert 2 * D + C <= OUT_LANES and C <= D

    # One zero-padded bf16 weight stack, computed ONCE (closure constant for jit).
    w_pack = jnp.stack(
        [jnp.pad(w, ((0, D - w.shape[0]), (0, D - w.shape[1]))) for w in weights]
    ).astype(jnp.bfloat16)

    kernel = functools.partial(net_kernel, out_dim=out_dim, n_chan=C, pack_dim=D)
    vmem = pl.BlockSpec(memory_space=pltpu.MemorySpace.VMEM)

    @jax.jit
    def forward(x_nchw):
        B, Cx, H, W = x_nchw.shape
        assert Cx == C
        HW = H * W
        # Channels-last so the in-kernel mean lands lane-dense (no XLU relayout
        # at the head of the serial dependence chain).
        x_bhwc = jnp.transpose(x_nchw.reshape(B, C, HW), (0, 2, 1))

        cost = pl.CostEstimate(
            flops=2 * B * N_LAYERS * D * D + B * C * HW,
            transcendentals=B * D,
            bytes_accessed=B * HW * C * 4 + w_pack.size * 2 + B * OUT_LANES * 4,
        )
        packed = pl.pallas_call(
            kernel,
            out_shape=jax.ShapeDtypeStruct((B, OUT_LANES), jnp.float32),
            in_specs=[vmem, vmem],
            out_specs=vmem,
            cost_estimate=cost,
        )(x_bhwc, w_pack)                           # w_pack: constant, no per-call packing

        p = packed[:, :out_dim]
        z = packed[:, D:D + z_dim]
        c = packed[:, 2 * D:2 * D + C]
        return p, z, jnp.squeeze(c)                 # torch.squeeze(c)

    return forward


def net_reference(x_nchw, weights):
    """Pure-JAX reference of the PyTorch forward, for correctness checking."""
    B, C, H, W = x_nchw.shape
    c = jnp.mean(x_nchw.reshape(B, C, H * W), axis=-1)
    h = c
    hp = jax.lax.Precision.HIGHEST
    for i in range(4):
        h = jax.nn.leaky_relu(jnp.dot(h, weights[i], precision=hp), NEG_SLOPE)
    z = h
    for i in range(4, 7):
        h = jax.nn.leaky_relu(jnp.dot(h, weights[i], precision=hp), NEG_SLOPE)
    p = jax.nn.softmax(jnp.dot(h, weights[7], precision=hp), axis=-1)
    return p, z, jnp.squeeze(c)


def make_weights(key, dims):
    """Deterministic bias-free Linear weights stored pre-transposed as (in, out)."""
    ws = []
    for i in range(len(dims) - 1):
        key, sub = jax.random.split(key)
        bound = 1.0 / (dims[i] ** 0.5)   # PyTorch Linear default init range
        ws.append(jax.random.uniform(sub, (dims[i], dims[i + 1]),
                                     dtype=jnp.float32, minval=-bound, maxval=bound))
    return ws


if __name__ == "__main__":
    # Wrg = Waz = 9 spatial window, C channels feeding linear1.
    B, C, H, W = 2, 4, 9, 9
    H1 = H2 = H3 = 32
    H4 = 8            # latent z dim
    H5 = H6 = H7 = 32
    OUT = 16          # softmax output dim

    key = jax.random.PRNGKey(0)
    kx, kw = jax.random.split(key)
    x = jax.random.normal(kx, (B, C, H, W), dtype=jnp.float32)
    weights = make_weights(kw, [C, H1, H2, H3, H4, H5, H6, H7, OUT])

    net_forward = make_net_forward(weights)
    p, z, c = jax.block_until_ready(net_forward(x))
    p_ref, z_ref, c_ref = net_reference(x, weights)

    assert p.shape == (B, OUT) and z.shape == (B, H4) and c.shape == (B, C)
    assert bool(jnp.allclose(c, c_ref, rtol=1e-5, atol=1e-5))
    # bf16 dot operands (f32 accumulate) -> small, absolute-scale deviations.
    assert bool(jnp.allclose(z, z_ref, rtol=1e-3, atol=1e-3))
    assert bool(jnp.allclose(p, p_ref, rtol=1e-2, atol=1e-3))
    # exact softmax division -> rows sum to 1 within f32 rounding.
    assert bool(jnp.all(jnp.abs(jnp.sum(p, axis=-1) - 1.0) < 1e-5))
    print("KERNEL_OK")
</pallas_src>

<mosaic_0001>
module attributes {stable_mosaic.version = 11 : i64} {
  func.func @net_kernel(%arg0: memref<2x81x4xf32, #tpu.memory_space<vmem>>, %arg1: memref<8x32x32xbf16, #tpu.memory_space<vmem>>, %arg2: memref<2x128xf32, #tpu.memory_space<vmem>>) attributes {dimension_semantics = [], scalar_prefetch = 0 : i64, scratch_operands = 0 : i64, tpu.core_type = #tpu.core_type<tc>} {
    %c0 = arith.constant 0 : index
    %c0_0 = arith.constant 0 : index
    %c0_1 = arith.constant 0 : index
    %0 = vector.load %arg0[%c0, %c0_0, %c0_1] : memref<2x81x4xf32, #tpu.memory_space<vmem>>, vector<2x81x4xf32>
    %cst = arith.constant dense<0.000000e+00> : vector<2x4xf32>
    %1 = vector.multi_reduction <add>, %0, %cst [1] : vector<2x81x4xf32> to vector<2x4xf32>
    %cst_2 = arith.constant 8.100000e+01 : f32
    %2 = vector.broadcast %cst_2 : f32 to vector<2x4xf32>
    %3 = arith.divf %1, %2 : vector<2x4xf32>
    %cst_3 = arith.constant 0.000000e+00 : f32
    %4 = vector.broadcast %cst_3 : f32 to vector<2x28xf32>
    %5 = tpu.concatenate %3, %4 in 1 : vector<2x4xf32>, vector<2x28xf32> -> vector<2x32xf32>
    %6 = arith.truncf %5 : vector<2x32xf32> to vector<2x32xbf16>
    %c0_4 = arith.constant 0 : index
    %c0_5 = arith.constant 0 : index
    %c0_6 = arith.constant 0 : index
    %7 = vector.load %arg1[%c0_4, %c0_5, %c0_6] : memref<8x32x32xbf16, #tpu.memory_space<vmem>>, vector<1x32x32xbf16>
    %8 = vector.shape_cast %7 : vector<1x32x32xbf16> to vector<32x32xbf16>
    %cst_7 = arith.constant dense<0.000000e+00> : vector<2x32xf32>
    %9 = tpu.matmul %6, %8, %cst_7 {dimension_numbers = #tpu.dot_dimension_numbers<[1], [0], [0], [1], [0, 0, 1, 1], [], []>} : vector<2x32xbf16>, vector<32x32xbf16>, vector<2x32xf32> -> vector<2x32xf32>
    %cst_8 = arith.constant 0.00999999977 : f32
    %10 = vector.broadcast %cst_8 : f32 to vector<2x32xf32>
    %11 = arith.mulf %10, %9 : vector<2x32xf32>
    %12 = arith.maximumf %9, %11 : vector<2x32xf32>
    %13 = arith.truncf %12 : vector<2x32xf32> to vector<2x32xbf16>
    %c1 = arith.constant 1 : index
    %c0_9 = arith.constant 0 : index
    %c0_10 = arith.constant 0 : index
    %14 = vector.load %arg1[%c1, %c0_9, %c0_10] : memref<8x32x32xbf16, #tpu.memory_space<vmem>>, vector<1x32x32xbf16>
    %15 = vector.shape_cast %14 : vector<1x32x32xbf16> to vector<32x32xbf16>
    %cst_11 = arith.constant dense<0.000000e+00> : vector<2x32xf32>
    %16 = tpu.matmul %13, %15, %cst_11 {dimension_numbers = #tpu.dot_dimension_numbers<[1], [0], [0], [1], [0, 0, 1, 1], [], []>} : vector<2x32xbf16>, vector<32x32xbf16>, vector<2x32xf32> -> vector<2x32xf32>
    %cst_12 = arith.constant 0.00999999977 : f32
    %17 = vector.broadcast %cst_12 : f32 to vector<2x32xf32>
    %18 = arith.mulf %17, %16 : vector<2x32xf32>
    %19 = arith.maximumf %16, %18 : vector<2x32xf32>
    %20 = arith.truncf %19 : vector<2x32xf32> to vector<2x32xbf16>
    %c2 = arith.constant 2 : index
    %c0_13 = arith.constant 0 : index
    %c0_14 = arith.constant 0 : index
    %21 = vector.load %arg1[%c2, %c0_13, %c0_14] : memref<8x32x32xbf16, #tpu.memory_space<vmem>>, vector<1x32x32xbf16>
    %22 = vector.shape_cast %21 : vector<1x32x32xbf16> to vector<32x32xbf16>
    %cst_15 = arith.constant dense<0.000000e+00> : vector<2x32xf32>
    %23 = tpu.matmul %20, %22, %cst_15 {dimension_numbers = #tpu.dot_dimension_numbers<[1], [0], [0], [1], [0, 0, 1, 1], [], []>} : vector<2x32xbf16>, vector<32x32xbf16>, vector<2x32xf32> -> vector<2x32xf32>
    %cst_16 = arith.constant 0.00999999977 : f32
    %24 = vector.broadcast %cst_16 : f32 to vector<2x32xf32>
    %25 = arith.mulf %24, %23 : vector<2x32xf32>
    %26 = arith.maximumf %23, %25 : vector<2x32xf32>
    %27 = arith.truncf %26 : vector<2x32xf32> to vector<2x32xbf16>
    %c3 = arith.constant 3 : index
    %c0_17 = arith.constant 0 : index
    %c0_18 = arith.constant 0 : index
    %28 = vector.load %arg1[%c3, %c0_17, %c0_18] : memref<8x32x32xbf16, #tpu.memory_space<vmem>>, vector<1x32x32xbf16>
    %29 = vector.shape_cast %28 : vector<1x32x32xbf16> to vector<32x32xbf16>
    %cst_19 = arith.constant dense<0.000000e+00> : vector<2x32xf32>
    %30 = tpu.matmul %27, %29, %cst_19 {dimension_numbers = #tpu.dot_dimension_numbers<[1], [0], [0], [1], [0, 0, 1, 1], [], []>} : vector<2x32xbf16>, vector<32x32xbf16>, vector<2x32xf32> -> vector<2x32xf32>
    %cst_20 = arith.constant 0.00999999977 : f32
    %31 = vector.broadcast %cst_20 : f32 to vector<2x32xf32>
    %32 = arith.mulf %31, %30 : vector<2x32xf32>
    %33 = arith.maximumf %30, %32 : vector<2x32xf32>
    %34 = arith.truncf %33 : vector<2x32xf32> to vector<2x32xbf16>
    %c4 = arith.constant 4 : index
    %c0_21 = arith.constant 0 : index
    %c0_22 = arith.constant 0 : index
    %35 = vector.load %arg1[%c4, %c0_21, %c0_22] : memref<8x32x32xbf16, #tpu.memory_space<vmem>>, vector<1x32x32xbf16>
    %36 = vector.shape_cast %35 : vector<1x32x32xbf16> to vector<32x32xbf16>
    %cst_23 = arith.constant dense<0.000000e+00> : vector<2x32xf32>
    %37 = tpu.matmul %34, %36, %cst_23 {dimension_numbers = #tpu.dot_dimension_numbers<[1], [0], [0], [1], [0, 0, 1, 1], [], []>} : vector<2x32xbf16>, vector<32x32xbf16>, vector<2x32xf32> -> vector<2x32xf32>
    %cst_24 = arith.constant 0.00999999977 : f32
    %38 = vector.broadcast %cst_24 : f32 to vector<2x32xf32>
    %39 = arith.mulf %38, %37 : vector<2x32xf32>
    %40 = arith.maximumf %37, %39 : vector<2x32xf32>
    %41 = arith.truncf %40 : vector<2x32xf32> to vector<2x32xbf16>
    %c5 = arith.constant 5 : index
    %c0_25 = arith.constant 0 : index
    %c0_26 = arith.constant 0 : index
    %42 = vector.load %arg1[%c5, %c0_25, %c0_26] : memref<8x32x32xbf16, #tpu.memory_space<vmem>>, vector<1x32x32xbf16>
    %43 = vector.shape_cast %42 : vector<1x32x32xbf16> to vector<32x32xbf16>
    %cst_27 = arith.constant dense<0.000000e+00> : vector<2x32xf32>
    %44 = tpu.matmul %41, %43, %cst_27 {dimension_numbers = #tpu.dot_dimension_numbers<[1], [0], [0], [1], [0, 0, 1, 1], [], []>} : vector<2x32xbf16>, vector<32x32xbf16>, vector<2x32xf32> -> vector<2x32xf32>
    %cst_28 = arith.constant 0.00999999977 : f32
    %45 = vector.broadcast %cst_28 : f32 to vector<2x32xf32>
    %46 = arith.mulf %45, %44 : vector<2x32xf32>
    %47 = arith.maximumf %44, %46 : vector<2x32xf32>
    %48 = arith.truncf %47 : vector<2x32xf32> to vector<2x32xbf16>
    %c6 = arith.constant 6 : index
    %c0_29 = arith.constant 0 : index
    %c0_30 = arith.constant 0 : index
    %49 = vector.load %arg1[%c6, %c0_29, %c0_30] : memref<8x32x32xbf16, #tpu.memory_space<vmem>>, vector<1x32x32xbf16>
    %50 = vector.shape_cast %49 : vector<1x32x32xbf16> to vector<32x32xbf16>
    %cst_31 = arith.constant dense<0.000000e+00> : vector<2x32xf32>
    %51 = tpu.matmul %48, %50, %cst_31 {dimension_numbers = #tpu.dot_dimension_numbers<[1], [0], [0], [1], [0, 0, 1, 1], [], []>} : vector<2x32xbf16>, vector<32x32xbf16>, vector<2x32xf32> -> vector<2x32xf32>
    %cst_32 = arith.constant 0.00999999977 : f32
    %52 = vector.broadcast %cst_32 : f32 to vector<2x32xf32>
    %53 = arith.mulf %52, %51 : vector<2x32xf32>
    %54 = arith.maximumf %51, %53 : vector<2x32xf32>
    %55 = arith.truncf %54 : vector<2x32xf32> to vector<2x32xbf16>
    %c7 = arith.constant 7 : index
    %c0_33 = arith.constant 0 : index
    %c0_34 = arith.constant 0 : index
    %56 = vector.load %arg1[%c7, %c0_33, %c0_34] : memref<8x32x32xbf16, #tpu.memory_space<vmem>>, vector<1x32x32xbf16>
    %57 = vector.shape_cast %56 : vector<1x32x32xbf16> to vector<32x32xbf16>
    %cst_35 = arith.constant dense<0.000000e+00> : vector<2x32xf32>
    %58 = tpu.matmul %55, %57, %cst_35 {dimension_numbers = #tpu.dot_dimension_numbers<[1], [0], [0], [1], [0, 0, 1, 1], [], []>} : vector<2x32xbf16>, vector<32x32xbf16>, vector<2x32xf32> -> vector<2x32xf32>
    %59 = tpu.iota {dimensions = array<i32: 1>} : vector<2x32xi32>
    %c16_i32 = arith.constant 16 : i32
    %60 = vector.broadcast %c16_i32 : i32 to vector<2x32xi32>
    %61 = arith.cmpi slt, %59, %60 : vector<2x32xi32>
    %cst_36 = arith.constant -1.000000e+30 : f32
    %62 = vector.broadcast %cst_36 : f32 to vector<2x32xf32>
    %63 = arith.select %61, %58, %62 : vector<2x32xi1>, vector<2x32xf32>
    %cst_37 = arith.constant dense<0xFF800000> : vector<2xf32>
    %64 = vector.multi_reduction <maximumf>, %63, %cst_37 [1] : vector<2x32xf32> to vector<2xf32>
    %65 = vector.shape_cast %64 : vector<2xf32> to vector<2x1xf32>
    %66 = vector.broadcast %65 : vector<2x1xf32> to vector<2x32xf32>
    %67 = arith.subf %63, %66 : vector<2x32xf32>
    %68 = math.exp %67 : vector<2x32xf32>
    %cst_38 = arith.constant dense<0.000000e+00> : vector<2xf32>
    %69 = vector.multi_reduction <add>, %68, %cst_38 [1] : vector<2x32xf32> to vector<2xf32>
    %70 = vector.shape_cast %69 : vector<2xf32> to vector<2x1xf32>
    %71 = vector.broadcast %70 : vector<2x1xf32> to vector<2x32xf32>
    %72 = arith.divf %68, %71 : vector<2x32xf32>
    %cst_39 = arith.constant 0.000000e+00 : f32
    %73 = vector.broadcast %cst_39 : f32 to vector<2x60xf32>
    %74 = tpu.concatenate %72, %33, %3, %73 in 1 : vector<2x32xf32>, vector<2x32xf32>, vector<2x4xf32>, vector<2x60xf32> -> vector<2x128xf32>
    %c0_40 = arith.constant 0 : index
    %c0_41 = arith.constant 0 : index
    %75 = vector.load %arg2[%c0_40, %c0_41] : memref<2x128xf32, #tpu.memory_space<vmem>>, vector<2x128xf32>
    tpu.vector_store %arg2[%c0_40, %c0_41], %74 {strides = array<i32>} : memref<2x128xf32, #tpu.memory_space<vmem>>, vector<2x128xf32>,
    return
  }
}

</mosaic_0001>

<llo_original>
// kernel: forward.1
$region0: #{forward.1}
  #allocation0 [shape = 'u32[]', space=smem, size = 0x4, offset = 0x4, fixed_abs, tag = 'smem constant byte address 0x4 - core index']
  #allocation1 [shape = 'u32[144,128]{1,0:T(1,128)}', space=vmem, size = 0x12000, scoped, tag = 'internal scratch']
  %s0 = inlined_call_operand.vmem [shape: f32[2,81,4], index: 0, kind: input, shape index: {}]
  %s1 = inlined_call_operand.vmem [shape: bf16[8,32,32], index: 1, kind: input, shape index: {}]
  %s2 = inlined_call_operand.vmem [shape: f32[2,128], index: 2, kind: output, shape index: {}]
  %s3 = sld [smem:[#allocation0]]
  $region18: #{forward.1} parent=0
    _
  %s5 = ssub.s32 1, %s3
  %s6 = scalar_select 0, %s5, %s3
  // Predicated region
  $region2: #{forward.1} parent=0 // pred_check
    _
  $region3: #{forward.1} parent=0 // pred_check_branch
    %8 = sbr.rel (0) target = $region5
  $region4: #{forward.1} parent=0 // pred_region
    _
  $region5: #{forward.1} parent=0 // pred_fallthru
    _
  // Predicated region
  $region6: #{forward.1} parent=0 // pred_check
    _
  $region7: #{forward.1} parent=0 // pred_check_branch
    %10 = sbr.rel (0) target = $region9
  $region8: #{forward.1} parent=0 // pred_region
    _
  $region9: #{forward.1} parent=0 // pred_fallthru
    _
  %v12 = vld [vmem:[%s0] sm:$0xff]
  %v13 = vld [vmem:[%s0 + $0x8] sm:$0xff]
  %v14 = vld [vmem:[%s0 + $0x10] sm:$0xff]
  %v15 = vld [vmem:[%s0 + $0x18] sm:$0xff]
  %v16 = vld [vmem:[%s0 + $0x20] sm:$0xff]
  %v17 = vld [vmem:[%s0 + $0x28] sm:$0xff]
  %v18 = vld [vmem:[%s0 + $0x30] sm:$0xff]
  %v19 = vld [vmem:[%s0 + $0x38] sm:$0xff]
  %v20 = vld [vmem:[%s0 + $0x40] sm:$0xff]
  %v21 = vld [vmem:[%s0 + $0x48] sm:$0xff]
  %v22 = vld [vmem:[%s0 + $0x50] sm:$0x1]
  %v23 = vld [vmem:[%s0 + $0x58] sm:$0xff]
  %v24 = vld [vmem:[%s0 + $0x60] sm:$0xff]
  %v25 = vld [vmem:[%s0 + $0x68] sm:$0xff]
  %v26 = vld [vmem:[%s0 + $0x70] sm:$0xff]
  %v27 = vld [vmem:[%s0 + $0x78] sm:$0xff]
  %v28 = vld [vmem:[%s0 + $0x80] sm:$0xff]
  %v29 = vld [vmem:[%s0 + $0x88] sm:$0xff]
  %v30 = vld [vmem:[%s0 + $0x90] sm:$0xff]
  %v31 = vld [vmem:[%s0 + $0x98] sm:$0xff]
  %v32 = vld [vmem:[%s0 + $0xa0] sm:$0xff]
  %v33 = vld [vmem:[%s0 + $0xa8] sm:$0x1]
  %vm34 = vcmask 31744
  %v35 = vsel %vm34, %v12, 0.0
  %v36 = vsel %vm34, %v13, 0.0
  %v37 = vadd.f32 %v35, %v36
  %v38 = vsel %vm34, %v14, 0.0
  %v39 = vadd.f32 %v37, %v38
  %v40 = vsel %vm34, %v15, 0.0
  %v41 = vadd.f32 %v39, %v40
  %v42 = vsel %vm34, %v16, 0.0
  %v43 = vadd.f32 %v41, %v42
  %v44 = vsel %vm34, %v17, 0.0
  %v45 = vadd.f32 %v43, %v44
  %v46 = vsel %vm34, %v18, 0.0
  %v47 = vadd.f32 %v45, %v46
  %v48 = vsel %vm34, %v19, 0.0
  %v49 = vadd.f32 %v47, %v48
  %v50 = vsel %vm34, %v20, 0.0
  %v51 = vadd.f32 %v49, %v50
  %v52 = vsel %vm34, %v21, 0.0
  %v53 = vadd.f32 %v51, %v52
  %vm54 = vcmask 24576
  %v55 = vsel %vm54, %v22, 0.0
  %v56 = vadd.f32 %v53, %v55
  %v57 = vrot.slane %v56, 4
  %v58 = vadd.f32 %v56, %v57
  %v59 = vrot.slane %v58, 2
  %v60 = vadd.f32 %v58, %v59
  %v61 = vrot.slane %v60, 1
  %v62 = vadd.f32 %v60, %v61
  %v63 = vsel %vm34, %v23, 0.0
  %v64 = vsel %vm34, %v24, 0.0
  %v65 = vadd.f32 %v63, %v64
  %v66 = vsel %vm34, %v25, 0.0
  %v67 = vadd.f32 %v65, %v66
  %v68 = vsel %vm34, %v26, 0.0
  %v69 = vadd.f32 %v67, %v68
  %v70 = vsel %vm34, %v27, 0.0
  %v71 = vadd.f32 %v69, %v70
  %v72 = vsel %vm34, %v28, 0.0
  %v73 = vadd.f32 %v71, %v72
  %v74 = vsel %vm34, %v29, 0.0
  %v75 = vadd.f32 %v73, %v74
  %v76 = vsel %vm34, %v30, 0.0
  %v77 = vadd.f32 %v75, %v76
  %v78 = vsel %vm34, %v31, 0.0
  %v79 = vadd.f32 %v77, %v78
  %v80 = vsel %vm34, %v32, 0.0
  %v81 = vadd.f32 %v79, %v80
  %v82 = vsel %vm54, %v33, 0.0
  %v83 = vadd.f32 %v81, %v82
  %v84 = vrot.slane %v83, 4
  %v85 = vadd.f32 %v83, %v84
  %v86 = vrot.slane %v85, 2
  %v87 = vadd.f32 %v85, %v86
  %v88 = vrot.slane %v87, 1
  %v89 = vadd.f32 %v87, %v88
  %v90 = vrcp.pop 81.0
  %v91 = vmul.f32 %v62, %v90
  %v92 = vmul.f32 %v89, %v90
  %vm95 = vcmask 1041409
  %v96 = vsel %vm95, %v92, %v91
  %v98 = vsel %vm34, %v96, 0.0
  %v99 = vpack.c.bf16 %v98, %v98
  %v100 = vld [vmem:[%s1] sm:$0xf]
  %v101 = vld [vmem:[%s1 + $0x4] sm:$0xf]
  %v102 = vld [vmem:[%s1 + $0x8] sm:$0xf]
  %v103 = vld [vmem:[%s1 + $0xc] sm:$0xf]
  %v108 = vunpack.c.l.b16 %v100
  %v109 = vunpack.c.l.b16 %v101
  %v110 = vunpack.c.l.b16 %v102
  %v111 = vunpack.c.l.b16 %v103
  %v112 = vpack.c.b16 %v109, %v108
  %v113 = vpack.c.b16 %v111, %v110
  %vm116 = vcmask 261120
  %v118 = vsel %vm116, %v99, 0
  %120 = vmatprep.subr.bf16.mxu0 0
  %121 = vmatpush1.bf16.msra.mxu0 0
  %122 = vmatprep.subr.bf16.mxu0 0
  %123 = vmatpush1.bf16.msra.mxu0 0
  %124 = vmatprep.subr.bf16.mxu0 0
  %125 = vmatpush1.bf16.msra.mxu0 0
  %126 = vmatprep.subr.bf16.mxu0 0
  %127 = vmatpush1.bf16.msra.mxu0 0
  %128 = vmatprep.subr.bf16.mxu0 0
  %129 = vmatpush1.bf16.msra.mxu0 0
  %130 = vmatprep.subr.bf16.mxu0 0
  %131 = vmatpush1.bf16.msra.mxu0 0
  %132 = vmatprep.subr.bf16.mxu0 0
  %133 = vmatpush1.bf16.msra.mxu0 %v113
  %134 = vmatprep.subr.bf16.mxu0 0
  %135 = vmatpush1.bf16.msra.mxu0 %v112
  %136 = vmatprep.subr.bf16.mxu0 0
  %137 = vmatpush2.bf16.msra.mxu0 0
  %138 = vmatprep.subr.bf16.mxu0 0
  %139 = vmatpush2.bf16.msra.mxu0 0
  %140 = vmatprep.subr.bf16.mxu0 0
  %141 = vmatpush2.bf16.msra.mxu0 0
  %142 = vmatprep.subr.bf16.mxu0 0
  %143 = vmatpush2.bf16.msra.mxu0 0
  %144 = vmatprep.subr.bf16.mxu0 0
  %145 = vmatpush2.bf16.msra.mxu0 0
  %146 = vmatprep.subr.bf16.mxu0 0
  %147 = vmatpush2.bf16.msra.mxu0 0
  %148 = vmatprep.subr.bf16.mxu0 0
  %149 = vmatpush2.bf16.msra.mxu0 0
  %150 = vmatprep.subr.bf16.mxu0 0
  %151 = vmatpush2.bf16.msra.mxu0 0
  %152 = vmatprep.mubr.bf16.mxu0 0
  %153 = vmatmul.mubr.bf16.gmra.mxu0 %v118
  %v154 = vpop.f32.mrf.mxu0
  %v155 = vadd.f32 0.0, %v154
  %v156 = vpop.f32.mrf.mxu0
  %v157 = vpop.f32.mrf.mxu0
  %v158 = vpop.f32.mrf.mxu0
  %159 = vdwg.mxu0
  %v160 = vmul.f32 %v155, 0.01
  %v161 = vmax.f32 %v155, %v160
  %v162 = vpack.c.bf16 %v161, %v161
  %s163 = scalar_lea.vmem %s1, 16
  %v164 = vld [vmem:[%s163] sm:$0xf]
  %v165 = vld [vmem:[%s163 + $0x4] sm:$0xf]
  %v166 = vld [vmem:[%s163 + $0x8] sm:$0xf]
  %v167 = vld [vmem:[%s163 + $0xc] sm:$0xf]
  %v172 = vunpack.c.l.b16 %v164
  %v173 = vunpack.c.l.b16 %v165
  %v174 = vunpack.c.l.b16 %v166
  %v175 = vunpack.c.l.b16 %v167
  %v176 = vpack.c.b16 %v173, %v172
  %v177 = vpack.c.b16 %v175, %v174
  %v181 = vsel %vm116, %v162, 0
  %183 = vmatprep.subr.bf16.mxu0 0
  %184 = vmatpush1.bf16.msra.mxu0 0
  %185 = vmatprep.subr.bf16.mxu0 0
  %186 = vmatpush1.bf16.msra.mxu0 0
  %187 = vmatprep.subr.bf16.mxu0 0
  %188 = vmatpush1.bf16.msra.mxu0 0
  %189 = vmatprep.subr.bf16.mxu0 0
  %190 = vmatpush1.bf16.msra.mxu0 0
  %191 = vmatprep.subr.bf16.mxu0 0
  %192 = vmatpush1.bf16.msra.mxu0 0
  %193 = vmatprep.subr.bf16.mxu0 0
  %194 = vmatpush1.bf16.msra.mxu0 0
  %195 = vmatprep.subr.bf16.mxu0 0
  %196 = vmatpush1.bf16.msra.mxu0 %v177
  %197 = vmatprep.subr.bf16.mxu0 0
  %198 = vmatpush1.bf16.msra.mxu0 %v176
  %199 = vmatprep.subr.bf16.mxu0 0
  %200 = vmatpush2.bf16.msra.mxu0 0
  %201 = vmatprep.subr.bf16.mxu0 0
  %202 = vmatpush2.bf16.msra.mxu0 0
  %203 = vmatprep.subr.bf16.mxu0 0
  %204 = vmatpush2.bf16.msra.mxu0 0
  %205 = vmatprep.subr.bf16.mxu0 0
  %206 = vmatpush2.bf16.msra.mxu0 0
  %207 = vmatprep.subr.bf16.mxu0 0
  %208 = vmatpush2.bf16.msra.mxu0 0
  %209 = vmatprep.subr.bf16.mxu0 0
  %210 = vmatpush2.bf16.msra.mxu0 0
  %211 = vmatprep.subr.bf16.mxu0 0
  %212 = vmatpush2.bf16.msra.mxu0 0
  %213 = vmatprep.subr.bf16.mxu0 0
  %214 = vmatpush2.bf16.msra.mxu0 0
  %215 = vmatprep.mubr.bf16.mxu0 0
  %216 = vmatmul.mubr.bf16.gmra.mxu0 %v181
  %v217 = vpop.f32.mrf.mxu0
  %v218 = vadd.f32 0.0, %v217
  %v219 = vpop.f32.mrf.mxu0
  %v220 = vpop.f32.mrf.mxu0
  %v221 = vpop.f32.mrf.mxu0
  %222 = vdwg.mxu0
  %v223 = vmul.f32 %v218, 0.01
  %v224 = vmax.f32 %v218, %v223
  %v225 = vpack.c.bf16 %v224, %v224
  %s226 = scalar_lea.vmem %s1, 32
  %v227 = vld [vmem:[%s226] sm:$0xf]
  %v228 = vld [vmem:[%s226 + $0x4] sm:$0xf]
  %v229 = vld [vmem:[%s226 + $0x8] sm:$0xf]
  %v230 = vld [vmem:[%s226 + $0xc] sm:$0xf]
  %v235 = vunpack.c.l.b16 %v227
  %v236 = vunpack.c.l.b16 %v228
  %v237 = vunpack.c.l.b16 %v229
  %v238 = vunpack.c.l.b16 %v230
  %v239 = vpack.c.b16 %v236, %v235
  %v240 = vpack.c.b16 %v238, %v237
  %v244 = vsel %vm116, %v225, 0
  %246 = vmatprep.subr.bf16.mxu0 0
  %247 = vmatpush1.bf16.msra.mxu0 0
  %248 = vmatprep.subr.bf16.mxu0 0
  %249 = vmatpush1.bf16.msra.mxu0 0
  %250 = vmatprep.subr.bf16.mxu0 0
  %251 = vmatpush1.bf16.msra.mxu0 0
  %252 = vmatprep.subr.bf16.mxu0 0
  %253 = vmatpush1.bf16.msra.mxu0 0
  %254 = vmatprep.subr.bf16.mxu0 0
  %255 = vmatpush1.bf16.msra.mxu0 0
  %256 = vmatprep.subr.bf16.mxu0 0
  %257 = vmatpush1.bf16.msra.mxu0 0
  %258 = vmatprep.subr.bf16.mxu0 0
  %259 = vmatpush1.bf16.msra.mxu0 %v240
  %260 = vmatprep.subr.bf16.mxu0 0
  %261 = vmatpush1.bf16.msra.mxu0 %v239
  %262 = vmatprep.subr.bf16.mxu0 0
  %263 = vmatpush2.bf16.msra.mxu0 0
  %264 = vmatprep.subr.bf16.mxu0 0
  %265 = vmatpush2.bf16.msra.mxu0 0
  %266 = vmatprep.subr.bf16.mxu0 0
  %267 = vmatpush2.bf16.msra.mxu0 0
  %268 = vmatprep.subr.bf16.mxu0 0
  %269 = vmatpush2.bf16.msra.mxu0 0
  %270 = vmatprep.subr.bf16.mxu0 0
  %271 = vmatpush2.bf16.msra.mxu0 0
  %272 = vmatprep.subr.bf16.mxu0 0
  %273 = vmatpush2.bf16.msra.mxu0 0
  %274 = vmatprep.subr.bf16.mxu0 0
  %275 = vmatpush2.bf16.msra.mxu0 0
  %276 = vmatprep.subr.bf16.mxu0 0
  %277 = vmatpush2.bf16.msra.mxu0 0
  %278 = vmatprep.mubr.bf16.mxu0 0
  %279 = vmatmul.mubr.bf16.gmra.mxu0 %v244
  %v280 = vpop.f32.mrf.mxu0
  %v281 = vadd.f32 0.0, %v280
  %v282 = vpop.f32.mrf.mxu0
  %v283 = vpop.f32.mrf.mxu0
  %v284 = vpop.f32.mrf.mxu0
  %285 = vdwg.mxu0
  %v286 = vmul.f32 %v281, 0.01
  %v287 = vmax.f32 %v281, %v286
  %v288 = vpack.c.bf16 %v287, %v287
  %s289 = scalar_lea.vmem %s1, 48
  %v290 = vld [vmem:[%s289] sm:$0xf]
  %v291 = vld [vmem:[%s289 + $0x4] sm:$0xf]
  %v292 = vld [vmem:[%s289 + $0x8] sm:$0xf]
  %v293 = vld [vmem:[%s289 + $0xc] sm:$0xf]
  %v298 = vunpack.c.l.b16 %v290
  %v299 = vunpack.c.l.b16 %v291
  %v300 = vunpack.c.l.b16 %v292
  %v301 = vunpack.c.l.b16 %v293
  %v302 = vpack.c.b16 %v299, %v298
  %v303 = vpack.c.b16 %v301, %v300
  %v307 = vsel %vm116, %v288, 0
  %309 = vmatprep.subr.bf16.mxu0 0
  %310 = vmatpush1.bf16.msra.mxu0 0
  %311 = vmatprep.subr.bf16.mxu0 0
  %312 = vmatpush1.bf16.msra.mxu0 0
  %313 = vmatprep.subr.bf16.mxu0 0
  %314 = vmatpush1.bf16.msra.mxu0 0
  %315 = vmatprep.subr.bf16.mxu0 0
  %316 = vmatpush1.bf16.msra.mxu0 0
  %317 = vmatprep.subr.bf16.mxu0 0
  %318 = vmatpush1.bf16.msra.mxu0 0
  %319 = vmatprep.subr.bf16.mxu0 0
  %320 = vmatpush1.bf16.msra.mxu0 0
  %321 = vmatprep.subr.bf16.mxu0 0
  %322 = vmatpush1.bf16.msra.mxu0 %v303
  %323 = vmatprep.subr.bf16.mxu0 0
  %324 = vmatpush1.bf16.msra.mxu0 %v302
  %325 = vmatprep.subr.bf16.mxu0 0
  %326 = vmatpush2.bf16.msra.mxu0 0
  %327 = vmatprep.subr.bf16.mxu0 0
  %328 = vmatpush2.bf16.msra.mxu0 0
  %329 = vmatprep.subr.bf16.mxu0 0
  %330 = vmatpush2.bf16.msra.mxu0 0
  %331 = vmatprep.subr.bf16.mxu0 0
  %332 = vmatpush2.bf16.msra.mxu0 0
  %333 = vmatprep.subr.bf16.mxu0 0
  %334 = vmatpush2.bf16.msra.mxu0 0
  %335 = vmatprep.subr.bf16.mxu0 0
  %336 = vmatpush2.bf16.msra.mxu0 0
  %337 = vmatprep.subr.bf16.mxu0 0
  %338 = vmatpush2.bf16.msra.mxu0 0
  %339 = vmatprep.subr.bf16.mxu0 0
  %340 = vmatpush2.bf16.msra.mxu0 0
  %341 = vmatprep.mubr.bf16.mxu0 0
  %342 = vmatmul.mubr.bf16.gmra.mxu0 %v307
  %v343 = vpop.f32.mrf.mxu0
  %v344 = vadd.f32 0.0, %v343
  %v345 = vpop.f32.mrf.mxu0
  %v346 = vpop.f32.mrf.mxu0
  %v347 = vpop.f32.mrf.mxu0
  %348 = vdwg.mxu0
  %v349 = vmul.f32 %v344, 0.01
  %v350 = vmax.f32 %v344, %v349
  %v351 = vpack.c.bf16 %v350, %v350
  %s352 = scalar_lea.vmem %s1, 64
  %v353 = vld [vmem:[%s352] sm:$0xf]
  %v354 = vld [vmem:[%s352 + $0x4] sm:$0xf]
  %v355 = vld [vmem:[%s352 + $0x8] sm:$0xf]
  %v356 = vld [vmem:[%s352 + $0xc] sm:$0xf]
  %v361 = vunpack.c.l.b16 %v353
  %v362 = vunpack.c.l.b16 %v354
  %v363 = vunpack.c.l.b16 %v355
  %v364 = vunpack.c.l.b16 %v356
  %v365 = vpack.c.b16 %v362, %v361
  %v366 = vpack.c.b16 %v364, %v363
  %v370 = vsel %vm116, %v351, 0
  %372 = vmatprep.subr.bf16.mxu0 0
  %373 = vmatpush1.bf16.msra.mxu0 0
  %374 = vmatprep.subr.bf16.mxu0 0
  %375 = vmatpush1.bf16.msra.mxu0 0
  %376 = vmatprep.subr.bf16.mxu0 0
  %377 = vmatpush1.bf16.msra.mxu0 0
  %378 = vmatprep.subr.bf16.mxu0 0
  %379 = vmatpush1.bf16.msra.mxu0 0
  %380 = vmatprep.subr.bf16.mxu0 0
  %381 = vmatpush1.bf16.msra.mxu0 0
  %382 = vmatprep.subr.bf16.mxu0 0
  %383 = vmatpush1.bf16.msra.mxu0 0
  %384 = vmatprep.subr.bf16.mxu0 0
  %385 = vmatpush1.bf16.msra.mxu0 %v366
  %386 = vmatprep.subr.bf16.mxu0 0
  %387 = vmatpush1.bf16.msra.mxu0 %v365
  %388 = vmatprep.subr.bf16.mxu0 0
  %389 = vmatpush2.bf16.msra.mxu0 0
  %390 = vmatprep.subr.bf16.mxu0 0
  %391 = vmatpush2.bf16.msra.mxu0 0
  %392 = vmatprep.subr.bf16.mxu0 0
  %393 = vmatpush2.bf16.msra.mxu0 0
  %394 = vmatprep.subr.bf16.mxu0 0
  %395 = vmatpush2.bf16.msra.mxu0 0
  %396 = vmatprep.subr.bf16.mxu0 0
  %397 = vmatpush2.bf16.msra.mxu0 0
  %398 = vmatprep.subr.bf16.mxu0 0
  %399 = vmatpush2.bf16.msra.mxu0 0
  %400 = vmatprep.subr.bf16.mxu0 0
  %401 = vmatpush2.bf16.msra.mxu0 0
  %402 = vmatprep.subr.bf16.mxu0 0
  %403 = vmatpush2.bf16.msra.mxu0 0
  %404 = vmatprep.mubr.bf16.mxu0 0
  %405 = vmatmul.mubr.bf16.gmra.mxu0 %v370
  %v406 = vpop.f32.mrf.mxu0
  %v407 = vadd.f32 0.0, %v406
  %v408 = vpop.f32.mrf.mxu0
  %v409 = vpop.f32.mrf.mxu0
  %v410 = vpop.f32.mrf.mxu0
  %411 = vdwg.mxu0
  %v412 = vmul.f32 %v407, 0.01
  %v413 = vmax.f32 %v407, %v412
  %v414 = vpack.c.bf16 %v413, %v413
  %s415 = scalar_lea.vmem %s1, 80
  %v416 = vld [vmem:[%s415] sm:$0xf]
  %v417 = vld [vmem:[%s415 + $0x4] sm:$0xf]
  %v418 = vld [vmem:[%s415 + $0x8] sm:$0xf]
  %v419 = vld [vmem:[%s415 + $0xc] sm:$0xf]
  %v424 = vunpack.c.l.b16 %v416
  %v425 = vunpack.c.l.b16 %v417
  %v426 = vunpack.c.l.b16 %v418
  %v427 = vunpack.c.l.b16 %v419
  %v428 = vpack.c.b16 %v425, %v424
  %v429 = vpack.c.b16 %v427, %v426
  %v433 = vsel %vm116, %v414, 0
  %435 = vmatprep.subr.bf16.mxu0 0
  %436 = vmatpush1.bf16.msra.mxu0 0
  %437 = vmatprep.subr.bf16.mxu0 0
  %438 = vmatpush1.bf16.msra.mxu0 0
  %439 = vmatprep.subr.bf16.mxu0 0
  %440 = vmatpush1.bf16.msra.mxu0 0
  %441 = vmatprep.subr.bf16.mxu0 0
  %442 = vmatpush1.bf16.msra.mxu0 0
  %443 = vmatprep.subr.bf16.mxu0 0
  %444 = vmatpush1.bf16.msra.mxu0 0
  %445 = vmatprep.subr.bf16.mxu0 0
  %446 = vmatpush1.bf16.msra.mxu0 0
  %447 = vmatprep.subr.bf16.mxu0 0
  %448 = vmatpush1.bf16.msra.mxu0 %v429
  %449 = vmatprep.subr.bf16.mxu0 0
  %450 = vmatpush1.bf16.msra.mxu0 %v428
  %451 = vmatprep.subr.bf16.mxu0 0
  %452 = vmatpush2.bf16.msra.mxu0 0
  %453 = vmatprep.subr.bf16.mxu0 0
  %454 = vmatpush2.bf16.msra.mxu0 0
  %455 = vmatprep.subr.bf16.mxu0 0
  %456 = vmatpush2.bf16.msra.mxu0 0
  %457 = vmatprep.subr.bf16.mxu0 0
  %458 = vmatpush2.bf16.msra.mxu0 0
  %459 = vmatprep.subr.bf16.mxu0 0
  %460 = vmatpush2.bf16.msra.mxu0 0
  %461 = vmatprep.subr.bf16.mxu0 0
  %462 = vmatpush2.bf16.msra.mxu0 0
  %463 = vmatprep.subr.bf16.mxu0 0
  %464 = vmatpush2.bf16.msra.mxu0 0
  %465 = vmatprep.subr.bf16.mxu0 0
  %466 = vmatpush2.bf16.msra.mxu0 0
  %467 = vmatprep.mubr.bf16.mxu0 0
  %468 = vmatmul.mubr.bf16.gmra.mxu0 %v433
  %v469 = vpop.f32.mrf.mxu0
  %v470 = vadd.f32 0.0, %v469
  %v471 = vpop.f32.mrf.mxu0
  %v472 = vpop.f32.mrf.mxu0
  %v473 = vpop.f32.mrf.mxu0
  %474 = vdwg.mxu0
  %v475 = vmul.f32 %v470, 0.01
  %v476 = vmax.f32 %v470, %v475
  %v477 = vpack.c.bf16 %v476, %v476
  %s478 = scalar_lea.vmem %s1, 96
  %v479 = vld [vmem:[%s478] sm:$0xf]
  %v480 = vld [vmem:[%s478 + $0x4] sm:$0xf]
  %v481 = vld [vmem:[%s478 + $0x8] sm:$0xf]
  %v482 = vld [vmem:[%s478 + $0xc] sm:$0xf]
  %v487 = vunpack.c.l.b16 %v479
  %v488 = vunpack.c.l.b16 %v480
  %v489 = vunpack.c.l.b16 %v481
  %v490 = vunpack.c.l.b16 %v482
  %v491 = vpack.c.b16 %v488, %v487
  %v492 = vpack.c.b16 %v490, %v489
  %v496 = vsel %vm116, %v477, 0
  %498 = vmatprep.subr.bf16.mxu0 0
  %499 = vmatpush1.bf16.msra.mxu0 0
  %500 = vmatprep.subr.bf16.mxu0 0
  %501 = vmatpush1.bf16.msra.mxu0 0
  %502 = vmatprep.subr.bf16.mxu0 0
  %503 = vmatpush1.bf16.msra.mxu0 0
  %504 = vmatprep.subr.bf16.mxu0 0
  %505 = vmatpush1.bf16.msra.mxu0 0
  %506 = vmatprep.subr.bf16.mxu0 0
  %507 = vmatpush1.bf16.msra.mxu0 0
  %508 = vmatprep.subr.bf16.mxu0 0
  %509 = vmatpush1.bf16.msra.mxu0 0
  %510 = vmatprep.subr.bf16.mxu0 0
  %511 = vmatpush1.bf16.msra.mxu0 %v492
  %512 = vmatprep.subr.bf16.mxu0 0
  %513 = vmatpush1.bf16.msra.mxu0 %v491
  %514 = vmatprep.subr.bf16.mxu0 0
  %515 = vmatpush2.bf16.msra.mxu0 0
  %516 = vmatprep.subr.bf16.mxu0 0
  %517 = vmatpush2.bf16.msra.mxu0 0
  %518 = vmatprep.subr.bf16.mxu0 0
  %519 = vmatpush2.bf16.msra.mxu0 0
  %520 = vmatprep.subr.bf16.mxu0 0
  %521 = vmatpush2.bf16.msra.mxu0 0
  %522 = vmatprep.subr.bf16.mxu0 0
  %523 = vmatpush2.bf16.msra.mxu0 0
  %524 = vmatprep.subr.bf16.mxu0 0
  %525 = vmatpush2.bf16.msra.mxu0 0
  %526 = vmatprep.subr.bf16.mxu0 0
  %527 = vmatpush2.bf16.msra.mxu0 0
  %528 = vmatprep.subr.bf16.mxu0 0
  %529 = vmatpush2.bf16.msra.mxu0 0
  %530 = vmatprep.mubr.bf16.mxu0 0
  %531 = vmatmul.mubr.bf16.gmra.mxu0 %v496
  %v532 = vpop.f32.mrf.mxu0
  %v533 = vadd.f32 0.0, %v532
  %v534 = vpop.f32.mrf.mxu0
  %v535 = vpop.f32.mrf.mxu0
  %v536 = vpop.f32.mrf.mxu0
  %537 = vdwg.mxu0
  %v538 = vmul.f32 %v533, 0.01
  %v539 = vmax.f32 %v533, %v538
  %v540 = vpack.c.bf16 %v539, %v539
  %s541 = scalar_lea.vmem %s1, 112
  %v542 = vld [vmem:[%s541] sm:$0xf]
  %v543 = vld [vmem:[%s541 + $0x4] sm:$0xf]
  %v544 = vld [vmem:[%s541 + $0x8] sm:$0xf]
  %v545 = vld [vmem:[%s541 + $0xc] sm:$0xf]
  %v550 = vunpack.c.l.b16 %v542
  %v551 = vunpack.c.l.b16 %v543
  %v552 = vunpack.c.l.b16 %v544
  %v553 = vunpack.c.l.b16 %v545
  %v554 = vpack.c.b16 %v551, %v550
  %v555 = vpack.c.b16 %v553, %v552
  %v559 = vsel %vm116, %v540, 0
  %561 = vmatprep.subr.bf16.mxu0 0
  %562 = vmatpush1.bf16.msra.mxu0 0
  %563 = vmatprep.subr.bf16.mxu0 0
  %564 = vmatpush1.bf16.msra.mxu0 0
  %565 = vmatprep.subr.bf16.mxu0 0
  %566 = vmatpush1.bf16.msra.mxu0 0
  %567 = vmatprep.subr.bf16.mxu0 0
  %568 = vmatpush1.bf16.msra.mxu0 0
  %569 = vmatprep.subr.bf16.mxu0 0
  %570 = vmatpush1.bf16.msra.mxu0 0
  %571 = vmatprep.subr.bf16.mxu0 0
  %572 = vmatpush1.bf16.msra.mxu0 0
  %573 = vmatprep.subr.bf16.mxu0 0
  %574 = vmatpush1.bf16.msra.mxu0 %v555
  %575 = vmatprep.subr.bf16.mxu0 0
  %576 = vmatpush1.bf16.msra.mxu0 %v554
  %577 = vmatprep.subr.bf16.mxu0 0
  %578 = vmatpush2.bf16.msra.mxu0 0
  %579 = vmatprep.subr.bf16.mxu0 0
  %580 = vmatpush2.bf16.msra.mxu0 0
  %581 = vmatprep.subr.bf16.mxu0 0
  %582 = vmatpush2.bf16.msra.mxu0 0
  %583 = vmatprep.subr.bf16.mxu0 0
  %584 = vmatpush2.bf16.msra.mxu0 0
  %585 = vmatprep.subr.bf16.mxu0 0
  %586 = vmatpush2.bf16.msra.mxu0 0
  %587 = vmatprep.subr.bf16.mxu0 0
  %588 = vmatpush2.bf16.msra.mxu0 0
  %589 = vmatprep.subr.bf16.mxu0 0
  %590 = vmatpush2.bf16.msra.mxu0 0
  %591 = vmatprep.subr.bf16.mxu0 0
  %592 = vmatpush2.bf16.msra.mxu0 0
  %593 = vmatprep.mubr.bf16.mxu0 0
  %594 = vmatmul.mubr.bf16.gmra.mxu0 %v559
  %v595 = vpop.f32.mrf.mxu0
  %v596 = vadd.f32 0.0, %v595
  %v597 = vpop.f32.mrf.mxu0
  %v598 = vpop.f32.mrf.mxu0
  %v599 = vpop.f32.mrf.mxu0
  %600 = vdwg.mxu0
  %v601 = vlaneseq
  %v602 = vand.u32 %v601, 127
  %vm603 = vcmp.lt.s32.totalorder %v602, 16
  %v604 = vsel %vm603, %v596, -1e+30
  %vm605 = vcmask 254976
  %v606 = vsel %vm605, %v604, -inf
  %607 = vmax.xlane.f32.xlu0 %v606
  %v608 = vpop.xlane.xlu0 %607
  %v609 = vsub.f32 %v604, %v608
  %v610 = vmul.f32 %v609, 1.442695
  %v611 = vpow.pop %v610
  %v612 = vsel %vm605, %v611, 0.0
  %613 = vadd.xlane.f32.xlu0 %v612
  %v614 = vpop.xlane.xlu0 %613
  %v615 = vrcp.pop %v614
  %v616 = vmul.f32 %v611, %v615
  %618 = vrot.lane.b32.xlu0 %v350, 32
  %v619 = vpop.permute.xlu0 %618
  %621 = vrot.lane.b32.xlu0 %v96, 64
  %v622 = vpop.permute.xlu0 %621
  %v624 = vsel %vm116, %v616, %v619
  %vm625 = vcmask 523264
  %v626 = vsel %vm625, %v624, %v622
  %vm627 = vcmask 556032
  %v628 = vsel %vm627, %v626, 0.0
  %629 = vst [vmem:[%s2] sm:$0x3] %v628
  // Predicated region
  $region10: #{forward.1} parent=0 // pred_check
    _
  $region11: #{forward.1} parent=0 // pred_check_branch
    %631 = sbr.rel (0) target = $region13
  $region12: #{forward.1} parent=0 // pred_region
    _
  $region13: #{forward.1} parent=0 // pred_fallthru
    _
  // Predicated region
  $region14: #{forward.1} parent=0 // pred_check
    _
  $region15: #{forward.1} parent=0 // pred_check_branch
    %633 = sbr.rel (0) target = $region17
  $region16: #{forward.1} parent=0 // pred_region
    _
  $region17: #{forward.1} parent=0 // pred_fallthru
    _

</llo_original>
